<compile_context>
chip_gen: v6e
topology: v6e:2x2x1
jax: 0.10.0
libtpu: 0.0.40
codegen_flags: <defaults>
</compile_context>

<pallas_src>
import jax
import jax.numpy as jnp
from jax import lax
from jax.experimental import pallas as pl
from jax.experimental.pallas import tpu as pltpu

HIDDEN = 128
NEG_SLOPE = 0.01


def _round_up(n, m):
    return (n + m - 1) // m * m


def _disc_kernel(x_ref, w1_ref, b1_ref, w2_ref, b2_ref, o_ref):
    # x_ref : (TB, D)        current batch tile
    # w1_ref: (128, D)       PyTorch layout, VMEM-resident
    # b1_ref: (1, 128)       VMEM-resident
    # w2_ref: (1, 128)       VMEM-resident
    # b2_ref: (1, 1)         SMEM scalar
    # o_ref : (1, 1, TB)     lane-dense output row for this tile
    x = x_ref[...]

    # Linear 1: h = x @ w1.T  (contract feature dims; rhs-transposed MXU dot)
    h = lax.dot_general(
        x, w1_ref[...],
        dimension_numbers=(((1,), (1,)), ((), ())),
        preferred_element_type=jnp.float32,
    )
    h = h + b1_ref[...]                       # (TB, 128) + (1, 128)

    # LeakyReLU(0.01)
    h = jnp.where(h > 0, h, NEG_SLOPE * h)

    # Linear 2, lane-dense: z = w2 @ h.T -> (1, TB)
    z = lax.dot_general(
        w2_ref[...].astype(jnp.float32), h,
        dimension_numbers=(((1,), (1,)), ((), ())),
        preferred_element_type=jnp.float32,
    )
    z = z + b2_ref[0, 0]

    # Sigmoid
    out = 1.0 / (1.0 + jnp.exp(-z))
    o_ref[...] = out.reshape(1, 1, -1).astype(o_ref.dtype)


def discriminator_forward(x, w1, b1, w2, b2, *, block_b=512):
    """Forward pass of the Discriminator.

    x : (B, img_dim)          activations
    w1: (128, img_dim), b1: (128,)   first Linear (PyTorch layout)
    w2: (1, 128),       b2: (1,)     second Linear (PyTorch layout)
    Returns (B, 1) in x.dtype.
    """
    B, D = x.shape

    # Tile size: multiple of 8 (sublane), capped by block_b; pad B up to it.
    TB = min(block_b, _round_up(B, 8))
    Bp = _round_up(B, TB)
    if Bp != B:
        x = jnp.pad(x, ((0, Bp - B), (0, 0)))
    nb = Bp // TB

    b1_2d = b1.reshape(1, HIDDEN)
    w2_2d = w2.reshape(1, HIDDEN)
    b2_sc = b2.reshape(1, 1)

    out = pl.pallas_call(
        _disc_kernel,
        out_shape=jax.ShapeDtypeStruct((nb, 1, TB), x.dtype),
        grid=(nb,),
        in_specs=[
            pl.BlockSpec((TB, D), lambda i: (i, 0)),          # x: tiled over batch
            pl.BlockSpec((HIDDEN, D), lambda i: (0, 0)),       # w1: resident
            pl.BlockSpec((1, HIDDEN), lambda i: (0, 0)),       # b1: resident
            pl.BlockSpec((1, HIDDEN), lambda i: (0, 0)),       # w2: resident
            pl.BlockSpec(memory_space=pltpu.MemorySpace.SMEM), # b2: SMEM scalar
        ],
        out_specs=pl.BlockSpec((1, 1, TB), lambda i: (i, 0, 0)),
        compiler_params=pltpu.CompilerParams(
            dimension_semantics=("parallel",),
        ),
    )(x, w1, b1_2d, w2_2d, b2_sc)

    # (nb, 1, TB) -> (Bp,) -> drop padding -> (B, 1)
    return out.reshape(Bp)[:B].reshape(B, 1)


def _reference(x, w1, b1, w2, b2):
    h = x @ w1.T + b1
    h = jnp.where(h > 0, h, NEG_SLOPE * h)
    z = h @ w2.T + b2
    return 1.0 / (1.0 + jnp.exp(-z))


def _init_params(key, img_dim):
    kw1, kb1, kw2, kb2 = jax.random.split(key, 4)
    bound1 = 1.0 / jnp.sqrt(img_dim)
    w1 = jax.random.uniform(kw1, (HIDDEN, img_dim), jnp.float32, -bound1, bound1)
    b1 = jax.random.uniform(kb1, (HIDDEN,), jnp.float32, -bound1, bound1)
    bound2 = 1.0 / jnp.sqrt(HIDDEN)
    w2 = jax.random.uniform(kw2, (1, HIDDEN), jnp.float32, -bound2, bound2)
    b2 = jax.random.uniform(kb2, (1,), jnp.float32, -bound2, bound2)
    return w1, b1, w2, b2


if __name__ == "__main__":
    IMG_DIM = 64
    key = jax.random.PRNGKey(0)
    kx1, kx2, kp = jax.random.split(key, 3)
    w1, b1, w2, b2 = _init_params(kp, IMG_DIM)

    # Case 1: small batch, single tile.
    B1 = 8
    x1 = jax.random.normal(kx1, (B1, IMG_DIM), dtype=jnp.float32)
    out1 = jax.block_until_ready(discriminator_forward(x1, w1, b1, w2, b2))
    ref1 = _reference(x1, w1, b1, w2, b2)
    assert out1.shape == (B1, 1), out1.shape
    assert jnp.allclose(out1, ref1, atol=1e-5, rtol=1e-5), "mismatch (case 1)"

    # Case 2: multi-tile grid with a non-divisible batch (exercises padding).
    B2 = 37
    x2 = jax.random.normal(kx2, (B2, IMG_DIM), dtype=jnp.float32)
    out2 = jax.block_until_ready(
        discriminator_forward(x2, w1, b1, w2, b2, block_b=16))
    ref2 = _reference(x2, w1, b1, w2, b2)
    assert out2.shape == (B2, 1), out2.shape
    assert jnp.allclose(out2, ref2, atol=1e-5, rtol=1e-5), "mismatch (case 2)"

    print("KERNEL_OK")
</pallas_src>

<mosaic_0001>
module attributes {stable_mosaic.version = 11 : i64} {
  func.func @_disc_kernel(%arg0: i32, %arg1: memref<8x64xf32, #tpu.memory_space<vmem>>, %arg2: memref<128x64xf32, #tpu.memory_space<vmem>>, %arg3: memref<1x128xf32, #tpu.memory_space<vmem>>, %arg4: memref<1x128xf32, #tpu.memory_space<vmem>>, %arg5: memref<1x1xf32, #tpu.memory_space<smem>>, %arg6: memref<1x1x8xf32, #tpu.memory_space<vmem>>) attributes {dimension_semantics = [#tpu.dimension_semantics<parallel>], iteration_bounds = array<i64: 1>, scalar_prefetch = 0 : i64, scratch_operands = 0 : i64, tpu.core_type = #tpu.core_type<tc>, window_params = [{transform_indices = @transform_0, window_bounds = array<i64: 8, 64>}, {pipeline_mode = #tpu.pipeline_mode<synchronous>, transform_indices = @transform_1, window_bounds = array<i64: 128, 64>}, {pipeline_mode = #tpu.pipeline_mode<synchronous>, transform_indices = @transform_2, window_bounds = array<i64: 1, 128>}, {pipeline_mode = #tpu.pipeline_mode<synchronous>, transform_indices = @transform_3, window_bounds = array<i64: 1, 128>}, {transform_indices = @transform_4, window_bounds = array<i64: 1, 1>}, {transform_indices = @transform_5, window_bounds = array<i64: 1, 1, 8>}]} {
    %c0 = arith.constant 0 : index
    %c0_0 = arith.constant 0 : index
    %0 = vector.load %arg1[%c0, %c0_0] : memref<8x64xf32, #tpu.memory_space<vmem>>, vector<8x64xf32>
    %c0_1 = arith.constant 0 : index
    %c0_2 = arith.constant 0 : index
    %1 = vector.load %arg2[%c0_1, %c0_2] : memref<128x64xf32, #tpu.memory_space<vmem>>, vector<128x64xf32>
    %cst = arith.constant dense<0.000000e+00> : vector<8x128xf32>
    %2 = tpu.matmul %0, %1, %cst {dimension_numbers = #tpu.dot_dimension_numbers<[1], [1], [0], [0], [0, 0, 1, 0], [], []>} : vector<8x64xf32>, vector<128x64xf32>, vector<8x128xf32> -> vector<8x128xf32>
    %c0_3 = arith.constant 0 : index
    %c0_4 = arith.constant 0 : index
    %3 = vector.load %arg3[%c0_3, %c0_4] : memref<1x128xf32, #tpu.memory_space<vmem>>, vector<1x128xf32>
    %4 = vector.broadcast %3 : vector<1x128xf32> to vector<8x128xf32>
    %5 = arith.addf %2, %4 : vector<8x128xf32>
    %cst_5 = arith.constant 0.000000e+00 : f32
    %6 = vector.broadcast %cst_5 : f32 to vector<8x128xf32>
    %7 = arith.cmpf ogt, %5, %6 : vector<8x128xf32>
    %cst_6 = arith.constant 0.00999999977 : f32
    %8 = vector.broadcast %cst_6 : f32 to vector<8x128xf32>
    %9 = arith.mulf %8, %5 : vector<8x128xf32>
    %10 = arith.select %7, %5, %9 : vector<8x128xi1>, vector<8x128xf32>
    %c0_7 = arith.constant 0 : index
    %c0_8 = arith.constant 0 : index
    %11 = vector.load %arg4[%c0_7, %c0_8] : memref<1x128xf32, #tpu.memory_space<vmem>>, vector<1x128xf32>
    %cst_9 = arith.constant dense<0.000000e+00> : vector<1x8xf32>
    %12 = tpu.matmul %11, %10, %cst_9 {dimension_numbers = #tpu.dot_dimension_numbers<[1], [1], [0], [0], [0, 0, 1, 0], [], []>} : vector<1x128xf32>, vector<8x128xf32>, vector<1x8xf32> -> vector<1x8xf32>
    %c0_10 = arith.constant 0 : index
    %c0_11 = arith.constant 0 : index
    %13 = memref.load %arg5[%c0_10, %c0_11] : memref<1x1xf32, #tpu.memory_space<smem>>
    %14 = vector.broadcast %13 : f32 to vector<1x8xf32>
    %15 = arith.addf %12, %14 : vector<1x8xf32>
    %cst_12 = arith.constant 0.000000e+00 : f32
    %16 = vector.broadcast %cst_12 : f32 to vector<1x8xf32>
    %17 = arith.subf %16, %15 : vector<1x8xf32>
    %18 = math.exp %17 : vector<1x8xf32>
    %cst_13 = arith.constant 1.000000e+00 : f32
    %19 = vector.broadcast %cst_13 : f32 to vector<1x8xf32>
    %20 = arith.addf %19, %18 : vector<1x8xf32>
    %cst_14 = arith.constant 1.000000e+00 : f32
    %21 = vector.broadcast %cst_14 : f32 to vector<1x8xf32>
    %22 = arith.divf %21, %20 : vector<1x8xf32>
    %23 = vector.shape_cast %22 : vector<1x8xf32> to vector<1x1x8xf32>
    %c0_15 = arith.constant 0 : index
    %c0_16 = arith.constant 0 : index
    %c0_17 = arith.constant 0 : index
    %24 = vector.load %arg6[%c0_15, %c0_16, %c0_17] : memref<1x1x8xf32, #tpu.memory_space<vmem>>, vector<1x1x8xf32>
    tpu.vector_store %arg6[%c0_15, %c0_16, %c0_17], %23 {strides = array<i32>} : memref<1x1x8xf32, #tpu.memory_space<vmem>>, vector<1x1x8xf32>,
    return
  }
  func.func @transform_0(%arg0: i32) -> (i32, i32) {
    %c0_i32 = arith.constant 0 : i32
    %c0_i32_0 = arith.constant 0 : i32
    return %arg0, %c0_i32 : i32, i32
  }
  func.func @transform_1(%arg0: i32) -> (i32, i32) {
    %c0_i32 = arith.constant 0 : i32
    %c0_i32_0 = arith.constant 0 : i32
    %c0_i32_1 = arith.constant 0 : i32
    return %c0_i32, %c0_i32_0 : i32, i32
  }
  func.func @transform_2(%arg0: i32) -> (i32, i32) {
    %c0_i32 = arith.constant 0 : i32
    %c0_i32_0 = arith.constant 0 : i32
    %c0_i32_1 = arith.constant 0 : i32
    return %c0_i32, %c0_i32_0 : i32, i32
  }
  func.func @transform_3(%arg0: i32) -> (i32, i32) {
    %c0_i32 = arith.constant 0 : i32
    %c0_i32_0 = arith.constant 0 : i32
    %c0_i32_1 = arith.constant 0 : i32
    return %c0_i32, %c0_i32_0 : i32, i32
  }
  func.func @transform_4(%arg0: i32) -> (i32, i32) {
    %c0_i32 = arith.constant 0 : i32
    %c0_i32_0 = arith.constant 0 : i32
    %c0_i32_1 = arith.constant 0 : i32
    return %c0_i32, %c0_i32_0 : i32, i32
  }
  func.func @transform_5(%arg0: i32) -> (i32, i32, i32) {
    %c0_i32 = arith.constant 0 : i32
    %c0_i32_0 = arith.constant 0 : i32
    %c0_i32_1 = arith.constant 0 : i32
    return %arg0, %c0_i32, %c0_i32_0 : i32, i32, i32
  }
}

</mosaic_0001>

<llo_original>
// kernel: tpu_custom_call.1
$region0: #{tpu_custom_call.1}
  #allocation0 [shape = 'u32[]', space=smem, size = 0x4, offset = 0x4, fixed_abs, tag = 'smem constant byte address 0x4 - core index']
  #allocation1 [shape = 'u32[144,128]{1,0:T(1,128)}', space=vmem, size = 0x12000, scoped, tag = 'internal scratch']
  #allocation2 [shape = 'f32[1,1]{1,0:T(1,128)S(6)}', space=smem, size = 0x200, scoped, tag = 'scoped memory for tpu_custom_call.1']
  %s0 = inlined_call_operand.vmem [shape: f32[8,64], index: 0, kind: input, shape index: {}]
  %s1 = inlined_call_operand.vmem [shape: f32[128,64], index: 1, kind: input, shape index: {}]
  %s2 = inlined_call_operand.vmem [shape: f32[1,128], index: 2, kind: input, shape index: {}]
  %s3 = inlined_call_operand.vmem [shape: f32[1,128], index: 3, kind: input, shape index: {}]
  %s4 = inlined_call_operand.<no memory space> [shape: f32[1,1], index: 4, kind: input, shape index: {}]
  %s5 = inlined_call_operand.hbm [shape: f32[1,1,8], index: 5, kind: output, shape index: {}]
  %s6 = sld [smem:[#allocation0]]
  $region30: #{tpu_custom_call.1} parent=0
    _
  %s8 = ssub.s32 1, %s6
  %s9 = scalar_select 0, %s8, %s6
  %10 = sst [smem:[#allocation2]] %s4
  $region1: #{tpu_custom_call.1} parent=0
    #allocation3 [shape = 'u8[512]{0}', space=vmem, size = 0x400, scoped, tag = 'output window, operand 0, single buffered']
    #allocation4 [shape = 's32[1]{0}', space=sflag, size = 0x4, scoped, tag = 'scoped memory for tpu_custom_call.1']
    %11 = vsyncpa [#allocation4], 0
    // Predicated region
    $region2: #{tpu_custom_call.1} parent=1 // pred_check
      _
    $region3: #{tpu_custom_call.1} parent=1 // pred_check_branch
      %13 = sbr.rel (0) target = $region5
    $region4: #{tpu_custom_call.1} parent=1 // pred_region
      _
    $region5: #{tpu_custom_call.1} parent=1 // pred_fallthru
      _
    // Predicated region
    $region6: #{tpu_custom_call.1} parent=1 // pred_check
      _
    $region7: #{tpu_custom_call.1} parent=1 // pred_check_branch
      %15 = sbr.rel (0) target = $region9
    $region8: #{tpu_custom_call.1} parent=1 // pred_region
      _
    $region9: #{tpu_custom_call.1} parent=1 // pred_fallthru
      _
    // Predicated region
    $region10: #{tpu_custom_call.1} parent=1 // pred_check
      _
    $region11: #{tpu_custom_call.1} parent=1 // pred_check_branch
      %17 = sbr.rel (0) target = $region13
    $region12: #{tpu_custom_call.1} parent=1 // pred_region
      _
    $region13: #{tpu_custom_call.1} parent=1 // pred_fallthru
      _
    // Predicated region
    $region14: #{tpu_custom_call.1} parent=1 // pred_check
      _
    $region15: #{tpu_custom_call.1} parent=1 // pred_check_branch
      %19 = sbr.rel (0) target = $region17
    $region16: #{tpu_custom_call.1} parent=1 // pred_region
      _
    $region17: #{tpu_custom_call.1} parent=1 // pred_fallthru
      _
    // Predicated region
    $region18: #{tpu_custom_call.1} parent=1 // pred_check
      _
    $region19: #{tpu_custom_call.1} parent=1 // pred_check_branch
      %21 = sbr.rel (0) target = $region21
    $region20: #{tpu_custom_call.1} parent=1 // pred_region
      _
    $region21: #{tpu_custom_call.1} parent=1 // pred_fallthru
      _
    %v22 = vld [vmem:[%s0] sm:$0xff]
    %v23 = vld [vmem:[%s1] sm:$0xff]
    %v24 = vld [vmem:[%s1 + $0x8] sm:$0xff]
    %v25 = vld [vmem:[%s1 + $0x10] sm:$0xff]
    %v26 = vld [vmem:[%s1 + $0x18] sm:$0xff]
    %v27 = vld [vmem:[%s1 + $0x20] sm:$0xff]
    %v28 = vld [vmem:[%s1 + $0x28] sm:$0xff]
    %v29 = vld [vmem:[%s1 + $0x30] sm:$0xff]
    %v30 = vld [vmem:[%s1 + $0x38] sm:$0xff]
    %v31 = vld [vmem:[%s1 + $0x40] sm:$0xff]
    %v32 = vld [vmem:[%s1 + $0x48] sm:$0xff]
    %v33 = vld [vmem:[%s1 + $0x50] sm:$0xff]
    %v34 = vld [vmem:[%s1 + $0x58] sm:$0xff]
    %v35 = vld [vmem:[%s1 + $0x60] sm:$0xff]
    %v36 = vld [vmem:[%s1 + $0x68] sm:$0xff]
    %v37 = vld [vmem:[%s1 + $0x70] sm:$0xff]
    %v38 = vld [vmem:[%s1 + $0x78] sm:$0xff]
    %v39 = vld [vmem:[%s2] sm:$0x1]
    %v41 = vlaneseq
    %v42 = vshrl.u32 %v41, 7
    %v43 = vsub.s32 0, %v42
    %v44 = vrot.slane %v39, %v43
    %vm46 = vcmask 523264
    %v48 = vsel %vm46, %v22, 0
    %v51 = vsel %vm46, %v23, 0
    %v54 = vsel %vm46, %v24, 0
    %v57 = vsel %vm46, %v25, 0
    %v60 = vsel %vm46, %v26, 0
    %v63 = vsel %vm46, %v27, 0
    %v66 = vsel %vm46, %v28, 0
    %v69 = vsel %vm46, %v29, 0
    %v72 = vsel %vm46, %v30, 0
    %v75 = vsel %vm46, %v31, 0
    %v78 = vsel %vm46, %v32, 0
    %v81 = vsel %vm46, %v33, 0
    %v84 = vsel %vm46, %v34, 0
    %v87 = vsel %vm46, %v35, 0
    %v90 = vsel %vm46, %v36, 0
    %v93 = vsel %vm46, %v37, 0
    %v96 = vsel %vm46, %v38, 0
    %98 = vmatprep.subr.mxu0 0.0
    %99 = vmatpush1.xpose.msra.mxu0 %v96
    %100 = vmatprep.subr.mxu0 0.0
    %101 = vmatpush1.xpose.msra.mxu0 %v93
    %102 = vmatprep.subr.mxu0 0.0
    %103 = vmatpush1.xpose.msra.mxu0 %v90
    %104 = vmatprep.subr.mxu0 0.0
    %105 = vmatpush1.xpose.msra.mxu0 %v87
    %106 = vmatprep.subr.mxu0 0.0
    %107 = vmatpush1.xpose.msra.mxu0 %v84
    %108 = vmatprep.subr.mxu0 0.0
    %109 = vmatpush1.xpose.msra.mxu0 %v81
    %110 = vmatprep.subr.mxu0 0.0
    %111 = vmatpush1.xpose.msra.mxu0 %v78
    %112 = vmatprep.subr.mxu0 0.0
    %113 = vmatpush1.xpose.msra.mxu0 %v75
    %114 = vmatprep.subr.mxu0 0.0
    %115 = vmatpush1.xpose.msra.mxu0 %v72
    %116 = vmatprep.subr.mxu0 0.0
    %117 = vmatpush1.xpose.msra.mxu0 %v69
    %118 = vmatprep.subr.mxu0 0.0
    %119 = vmatpush1.xpose.msra.mxu0 %v66
    %120 = vmatprep.subr.mxu0 0.0
    %121 = vmatpush1.xpose.msra.mxu0 %v63
    %122 = vmatprep.subr.mxu0 0.0
    %123 = vmatpush1.xpose.msra.mxu0 %v60
    %124 = vmatprep.subr.mxu0 0.0
    %125 = vmatpush1.xpose.msra.mxu0 %v57
    %126 = vmatprep.subr.mxu0 0.0
    %127 = vmatpush1.xpose.msra.mxu0 %v54
    %128 = vmatprep.subr.mxu0 0.0
    %129 = vmatpush1.xpose.msra.mxu0 %v51
    %130 = vmatprep.subr.mxu0 0.0
    %131 = vmatpush2.xpose.msra.mxu0 0.0
    %132 = vmatprep.subr.mxu0 0.0
    %133 = vmatpush2.xpose.msra.mxu0 0.0
    %134 = vmatprep.subr.mxu0 0.0
    %135 = vmatpush2.xpose.msra.mxu0 0.0
    %136 = vmatprep.subr.mxu0 0.0
    %137 = vmatpush2.xpose.msra.mxu0 0.0
    %138 = vmatprep.subr.mxu0 0.0
    %139 = vmatpush2.xpose.msra.mxu0 0.0
    %140 = vmatprep.subr.mxu0 0.0
    %141 = vmatpush2.xpose.msra.mxu0 0.0
    %142 = vmatprep.subr.mxu0 0.0
    %143 = vmatpush2.xpose.msra.mxu0 0.0
    %144 = vmatprep.subr.mxu0 0.0
    %145 = vmatpush2.xpose.msra.mxu0 0.0
    %146 = vmatprep.subr.mxu0 0.0
    %147 = vmatpush2.xpose.msra.mxu0 0.0
    %148 = vmatprep.subr.mxu0 0.0
    %149 = vmatpush2.xpose.msra.mxu0 0.0
    %150 = vmatprep.subr.mxu0 0.0
    %151 = vmatpush2.xpose.msra.mxu0 0.0
    %152 = vmatprep.subr.mxu0 0.0
    %153 = vmatpush2.xpose.msra.mxu0 0.0
    %154 = vmatprep.subr.mxu0 0.0
    %155 = vmatpush2.xpose.msra.mxu0 0.0
    %156 = vmatprep.subr.mxu0 0.0
    %157 = vmatpush2.xpose.msra.mxu0 0.0
    %158 = vmatprep.subr.mxu0 0.0
    %159 = vmatpush2.xpose.msra.mxu0 0.0
    %160 = vmatprep.subr.mxu0 0.0
    %161 = vmatpush2.xpose.msra.mxu0 0.0
    %162 = vmatprep.mubr.f32.mxu0 0.0
    %163 = vmatmul.mubr.f32.gmra.mxu0 %v48
    %v164 = vpop.f32.mrf.mxu0
    %v165 = vadd.f32 %v44, %v164
    %v166 = vpop.f32.mrf.mxu0
    %167 = vdwg.mxu0
    %vm168 = vcmp.gt.f32.partialorder %v165, 0.0
    %v169 = vmul.f32 %v165, 0.01
    %v170 = vsel %vm168, %v165, %v169
    %v171 = vld [vmem:[%s3] sm:$0x1]
    %s172 = sld [smem:[#allocation2]]
    %v173 = vstv %s172
    %174 = vmatprep.subr.mxu0 0.0
    %175 = vmatpush1.xpose.msra.mxu0 0.0
    %176 = vmatprep.subr.mxu0 0.0
    %177 = vmatpush1.xpose.msra.mxu0 0.0
    %178 = vmatprep.subr.mxu0 0.0
    %179 = vmatpush1.xpose.msra.mxu0 0.0
    %180 = vmatprep.subr.mxu0 0.0
    %181 = vmatpush1.xpose.msra.mxu0 0.0
    %182 = vmatprep.subr.mxu0 0.0
    %183 = vmatpush1.xpose.msra.mxu0 0.0
    %184 = vmatprep.subr.mxu0 0.0
    %185 = vmatpush1.xpose.msra.mxu0 0.0
    %186 = vmatprep.subr.mxu0 0.0
    %187 = vmatpush1.xpose.msra.mxu0 0.0
    %188 = vmatprep.subr.mxu0 0.0
    %189 = vmatpush1.xpose.msra.mxu0 0.0
    %190 = vmatprep.subr.mxu0 0.0
    %191 = vmatpush1.xpose.msra.mxu0 0.0
    %192 = vmatprep.subr.mxu0 0.0
    %193 = vmatpush1.xpose.msra.mxu0 0.0
    %194 = vmatprep.subr.mxu0 0.0
    %195 = vmatpush1.xpose.msra.mxu0 0.0
    %196 = vmatprep.subr.mxu0 0.0
    %197 = vmatpush1.xpose.msra.mxu0 0.0
    %198 = vmatprep.subr.mxu0 0.0
    %199 = vmatpush1.xpose.msra.mxu0 0.0
    %200 = vmatprep.subr.mxu0 0.0
    %201 = vmatpush1.xpose.msra.mxu0 0.0
    %202 = vmatprep.subr.mxu0 0.0
    %203 = vmatpush1.xpose.msra.mxu0 0.0
    %204 = vmatprep.subr.mxu0 0.0
    %205 = vmatpush1.xpose.msra.mxu0 %v170
    %206 = vmatprep.subr.mxu0 0.0
    %207 = vmatpush2.xpose.msra.mxu0 0.0
    %208 = vmatprep.subr.mxu0 0.0
    %209 = vmatpush2.xpose.msra.mxu0 0.0
    %210 = vmatprep.subr.mxu0 0.0
    %211 = vmatpush2.xpose.msra.mxu0 0.0
    %212 = vmatprep.subr.mxu0 0.0
    %213 = vmatpush2.xpose.msra.mxu0 0.0
    %214 = vmatprep.subr.mxu0 0.0
    %215 = vmatpush2.xpose.msra.mxu0 0.0
    %216 = vmatprep.subr.mxu0 0.0
    %217 = vmatpush2.xpose.msra.mxu0 0.0
    %218 = vmatprep.subr.mxu0 0.0
    %219 = vmatpush2.xpose.msra.mxu0 0.0
    %220 = vmatprep.subr.mxu0 0.0
    %221 = vmatpush2.xpose.msra.mxu0 0.0
    %222 = vmatprep.subr.mxu0 0.0
    %223 = vmatpush2.xpose.msra.mxu0 0.0
    %224 = vmatprep.subr.mxu0 0.0
    %225 = vmatpush2.xpose.msra.mxu0 0.0
    %226 = vmatprep.subr.mxu0 0.0
    %227 = vmatpush2.xpose.msra.mxu0 0.0
    %228 = vmatprep.subr.mxu0 0.0
    %229 = vmatpush2.xpose.msra.mxu0 0.0
    %230 = vmatprep.subr.mxu0 0.0
    %231 = vmatpush2.xpose.msra.mxu0 0.0
    %232 = vmatprep.subr.mxu0 0.0
    %233 = vmatpush2.xpose.msra.mxu0 0.0
    %234 = vmatprep.subr.mxu0 0.0
    %235 = vmatpush2.xpose.msra.mxu0 0.0
    %236 = vmatprep.subr.mxu0 0.0
    %237 = vmatpush2.xpose.msra.mxu0 0.0
    %238 = vmatprep.mubr.f32.mxu0 0.0
    %239 = vmatmul.mubr.f32.gmra.mxu0 %v171
    %v240 = vpop.f32.mrf.mxu0
    %v241 = vadd.f32 %v173, %v240
    %v242 = vpop.f32.mrf.mxu0
    %243 = vdwg.mxu0
    %v244 = vsub.f32 0.0, %v241
    %v245 = vmul.f32 %v244, 1.442695
    %v246 = vpow.pop %v245
    %v247 = vadd.f32 %v246, 1.0
    %v248 = vrcp.pop %v247
    %v249 = vmul.f32 1.0, %v248
    %vm250 = vcmask 57344
    %251 = vst.msk [vmem:[#allocation3] sm:$0x1] %vm250, %v249
    // Predicated region
    $region22: #{tpu_custom_call.1} parent=1 // pred_check
      _
    $region23: #{tpu_custom_call.1} parent=1 // pred_check_branch
      %253 = sbr.rel (0) target = $region25
    $region24: #{tpu_custom_call.1} parent=1 // pred_region
      %s255 = ssub.s32 16, 16
      %256 = vsyncadd [#allocation4], %s255
      %s258 = sshll.u32 [#allocation3], 4
      %s259 = int_to_ptr.vmem [resolvable:$true] %s258
      %261 = dma.vmem_to_hbm [thread:$0]  %s259, 16, %s5, [#allocation4]
    $region25: #{tpu_custom_call.1} parent=1 // pred_fallthru
      _
    // Predicated region
    $region26: #{tpu_custom_call.1} parent=1 // pred_check
      _
    $region27: #{tpu_custom_call.1} parent=1 // pred_check_branch
      %263 = sbr.rel (0) target = $region29
    $region28: #{tpu_custom_call.1} parent=1 // pred_region
      %264 = dma.done [#allocation4], 16
    $region29: #{tpu_custom_call.1} parent=1 // pred_fallthru
      _
    %265 = vsyncpa [#allocation4], 1

</llo_original>
